<compile_context>
chip_gen: v7x
topology: tpu7x:2x2x1
jax: 0.10.0
libtpu: 0.0.40
codegen_flags: <defaults>
</compile_context>

<pallas_src>
import functools
import numpy as np
import jax
import jax.numpy as jnp
from jax import lax
from jax.experimental import pallas as pl
from jax.experimental.pallas import tpu as pltpu


# -----------------------------------------------------------------------------
# Pallas kernel 1: tiled GEMM (+bias) used for conv_offset_mask (im2col as glue)
# -----------------------------------------------------------------------------
def _mm_bias_kernel(a_ref, b_ref, bias_ref, o_ref):
    o_ref[...] = (jnp.dot(a_ref[...], b_ref[...],
                          preferred_element_type=jnp.float32)
                  + bias_ref[...]).astype(o_ref.dtype)


def _conv2d_nchw(x, w, b, stride, padding, dilation, *, tile_m=512):
    """Regular Conv2d (NCHW in, OIHW weights) = NHWC im2col glue + M-tiled Pallas GEMM.

    The im2col is done in NHWC so the only full-size transpose is on the UN-expanded
    input; the K tap slices concatenate directly into the GEMM row layout.
    TODO(synk): fully eliminating the K-times HBM expansion (tap gather inside the
    Pallas grid) is possible but left out; this path is secondary to the dsp kernel.
    """
    N, Cin, H, W = x.shape
    Cout, _, kh, kw = w.shape
    sh, sw = stride
    ph, pw = padding
    dh, dw = dilation
    Hout = (H + 2 * ph - (dh * (kh - 1) + 1)) // sh + 1
    Wout = (W + 2 * pw - (dw * (kw - 1) + 1)) // sw + 1
    K = kh * kw

    x_nhwc = jnp.transpose(x, (0, 2, 3, 1))                   # (N, H, W, Cin)
    xp = jnp.pad(x_nhwc, ((0, 0), (ph, ph), (pw, pw), (0, 0)))
    cols = []
    for i in range(kh):
        for j in range(kw):
            hs, ws = i * dh, j * dw
            cols.append(xp[:, hs:hs + sh * (Hout - 1) + 1:sh,
                           ws:ws + sw * (Wout - 1) + 1:sw, :])
    patches = jnp.concatenate(cols, axis=-1)                  # (N, Hout, Wout, K*Cin)
    patches2d = patches.reshape(N * Hout * Wout, K * Cin).astype(jnp.float32)

    M, Kc = patches2d.shape
    # Lane-dense output: pad Cout (27) up to 128 so stores are full `vst`; slice after.
    Cout_pad = pl.cdiv(Cout, 128) * 128
    TM = tile_m
    Mpad = pl.cdiv(M, TM) * TM
    a_pad = jnp.pad(patches2d, ((0, Mpad - M), (0, 0)))
    # weight reordered tap-major to match the NHWC patch layout: (kh,kw,Cin,Cout)
    w2d = jnp.pad(jnp.transpose(w, (2, 3, 1, 0)).reshape(K * Cin, Cout)
                  .astype(jnp.float32), ((0, 0), (0, Cout_pad - Cout)))
    bias2d = jnp.pad(b.reshape(1, Cout).astype(jnp.float32),
                     ((0, 0), (0, Cout_pad - Cout)))

    out2d = pl.pallas_call(
        _mm_bias_kernel,
        out_shape=jax.ShapeDtypeStruct((Mpad, Cout_pad), jnp.float32),
        grid=(Mpad // TM,),
        in_specs=[pl.BlockSpec((TM, Kc), lambda i: (i, 0)),
                  pl.BlockSpec((Kc, Cout_pad), lambda i: (0, 0)),
                  pl.BlockSpec((1, Cout_pad), lambda i: (0, 0))],
        out_specs=pl.BlockSpec((TM, Cout_pad), lambda i: (i, 0)),
        compiler_params=pltpu.CompilerParams(
            dimension_semantics=("parallel",),
            vmem_limit_bytes=32 * 1024 * 1024),
    )(a_pad, w2d, bias2d)
    out = out2d[:M, :Cout].reshape(N, Hout, Wout, Cout).transpose(0, 3, 1, 2)
    return out


# -----------------------------------------------------------------------------
# Pallas kernel 2: modulated deformable bilinear sampling (the dsp_v2 hot path)
# -----------------------------------------------------------------------------
def _dsp_kernel(omm_ref, x_ref, o_ref, *, H, W, K, HW):
    """One (batch, deformable-group, P-tile) step.

    omm_ref: (3, P_TILE, K) f32 = [abs sample row py ; abs sample col px ; mask]
    x_ref:   (Cg_pad, HW)   bf16 input feature plane of this (n, g)
    o_ref:   (Cg_pad, P_TILE) f32 output positions of this tile
    """
    py = omm_ref[0]                       # (P_TILE, K) absolute sample rows
    px = omm_ref[1]
    mk = omm_ref[2]
    P_TILE = py.shape[0]

    h_low = jnp.floor(py)
    w_low = jnp.floor(px)
    lh = py - h_low
    lw = px - w_low
    hh = 1.0 - lh
    hw_ = 1.0 - lw
    hl_i = h_low.astype(jnp.int32)
    wl_i = w_low.astype(jnp.int32)

    inr = (py > -1.0) & (px > -1.0) & (py < float(H)) & (px < float(W))
    v_h0 = hl_i >= 0
    v_h1 = hl_i + 1 <= H - 1
    v_w0 = wl_i >= 0
    v_w1 = wl_i + 1 <= W - 1

    # Modulation mask folded into the per-corner scalar weights on the small
    # (P_TILE, K) arrays.  Per-corner validity zeroes every wrap-around case.
    w1 = jnp.where(inr & v_h0 & v_w0, mk * (hh * hw_), 0.0)   # corner (hl,   wl)
    w2 = jnp.where(inr & v_h0 & v_w1, mk * (hh * lw), 0.0)    # corner (hl,   wl+1)
    w3 = jnp.where(inr & v_h1 & v_w0, mk * (lh * hw_), 0.0)   # corner (hl+1, wl)
    w4 = jnp.where(inr & v_h1 & v_w1, mk * (lh * lw), 0.0)    # corner (hl+1, wl+1)

    a_top = hl_i * W + wl_i               # flat anchor of corner (hl,   wl); may be < 0

    # Rolled corners with a NEGATIVE anchor index (one-hot all-zero) would be lost;
    # those contributions always target flat index 0, so they are patched once.
    wfix = (jnp.where((hl_i == 0) & (wl_i == -1), w2, 0.0)
            + jnp.where((hl_i == -1) & (wl_i == -1), w4, 0.0))
    patch = jnp.sum(wfix, axis=1, keepdims=True)              # (P_TILE, 1)

    hw_iota = lax.broadcasted_iota(jnp.int32, (P_TILE, HW), 1)
    k_iota = lax.broadcasted_iota(jnp.int32, (1, K), 1)

    # Two accumulators (left corners / right corners); the single roll is applied
    # AFTER the loop (roll is linear).  bf16 halves the per-pass vld/vst bytes.
    acc0 = jnp.where(hw_iota == 0, patch.astype(jnp.bfloat16), 0.0)
    accr0 = jnp.zeros((P_TILE, HW), jnp.bfloat16)

    def body(k, carry):
        acc, acc_roll = carry
        ksel = k_iota == k                                    # (1, K)

        def col(v):                                           # (P_TILE, K) -> (P_TILE, 1)
            return jnp.sum(jnp.where(ksel, v, 0), axis=1, keepdims=True)

        a_top_k = col(a_top)                                  # int32
        a_bot_k = a_top_k + W
        w1k = col(w1).astype(jnp.bfloat16)
        w2k = col(w2).astype(jnp.bfloat16)
        w3k = col(w3).astype(jnp.bfloat16)
        w4k = col(w4).astype(jnp.bfloat16)

        top_hit = hw_iota == a_top_k
        bot_hit = hw_iota == a_bot_k
        # top_hit and bot_hit are disjoint (anchors differ by W>0) -> nested selects.
        acc = acc + jnp.where(top_hit, w1k, jnp.where(bot_hit, w3k, 0.0))
        acc_roll = acc_roll + jnp.where(top_hit, w2k, jnp.where(bot_hit, w4k, 0.0))
        return acc, acc_roll

    acc, acc_roll = lax.fori_loop(0, K, body, (acc0, accr0), unroll=True)
    acc = acc + pltpu.roll(acc_roll, 1, 1)                    # single XLU pass

    # out[c, p] = sum_hw x[c, hw] * acc[p, hw]  -> MXU matmul, bf16 operands,
    # f32 accumulation (acc entries are sums of [0,1] bilinear*sigmoid weights).
    out = lax.dot_general(x_ref[...], acc,
                          (((1,), (1,)), ((), ())),
                          preferred_element_type=jnp.float32)  # (Cg_pad, P_TILE)
    o_ref[...] = out.astype(o_ref.dtype)


def dsp_v2_sample(x, offset, mask, kernel_size, stride, padding, dilation,
                  deformable_groups):
    """Equivalent of _backend.dsp_v2_forward (see NOTE at top)."""
    N, C, H, W = x.shape
    kh, kw = kernel_size
    sh, sw = stride
    ph, pw = padding
    dh, dw = dilation
    dg = deformable_groups
    K = kh * kw
    Hout = (H + 2 * ph - (dh * (kh - 1) + 1)) // sh + 1
    Wout = (W + 2 * pw - (dw * (kw - 1) + 1)) // sw + 1
    P = Hout * Wout
    HW = H * W
    Cg = C // dg

    # Cg padded to a sublane multiple so MXU feed / output store are not sublane-masked.
    Cg_pad = pl.cdiv(Cg, 8) * 8
    # P always padded to a lane multiple: lane-dense stores + >=2 grid steps.
    P_pad = pl.cdiv(P, 128) * 128

    x_r = x.reshape(N, dg, Cg, HW)
    if Cg_pad != Cg:
        x_r = jnp.pad(x_r, ((0, 0), (0, 0), (0, Cg_pad - Cg), (0, 0)))
    x_r = x_r.astype(jnp.bfloat16)

    # DCNv2 channel convention: offset[:, g*2K + 2k] = dy, offset[:, g*2K + 2k+1] = dx
    off_r = offset.reshape(N, dg, 2 * K, Hout, Wout)
    offy = off_r[:, :, 0::2].reshape(N, dg, K, P)
    offx = off_r[:, :, 1::2].reshape(N, dg, K, P)
    msk = mask.reshape(N, dg, K, P)

    # Fold the static base sampling grid into the offsets on the host so the kernel
    # only needs one combined side input, laid out (N, dg, 3, P, K) so the kernel
    # reads py/px/mk via free leading-axis indexing (no unaligned lane slices).
    pp = np.arange(P)
    kk = np.arange(K)
    base_y = ((pp // Wout)[None, :] * sh - ph + (kk // kw)[:, None] * dh
              ).astype(np.float32)                                    # (K, P)
    base_x = ((pp % Wout)[None, :] * sw - pw + (kk % kw)[:, None] * dw
              ).astype(np.float32)
    py_abs = offy.astype(jnp.float32) + jnp.asarray(base_y)[None, None]
    px_abs = offx.astype(jnp.float32) + jnp.asarray(base_x)[None, None]
    omm = jnp.stack([py_abs, px_abs, msk.astype(jnp.float32)], axis=2)  # (N,dg,3,K,P)
    omm = omm.transpose(0, 1, 2, 4, 3)                                  # (N,dg,3,P,K)
    if P_pad != P:
        # zero padding => mask 0 => all corner weights 0 => padded output columns 0.
        omm = jnp.pad(omm, ((0, 0), (0, 0), (0, 0), (0, P_pad - P), (0, 0)))

    # Output-position tiling bounds the O(P_TILE*HW) temporaries; cap at 128 for big
    # feature maps (v7x 64 MiB VMEM), use 256 when there are enough tiles to spare.
    if HW >= 8192:
        P_TILE = 128
    elif P_pad % 256 == 0 and P_pad >= 512:
        P_TILE = 256
    else:
        P_TILE = 128
    n_pt = P_pad // P_TILE
    # TODO(synk): for very large H*W also tile the HW axis as an "arbitrary" reduction
    # with a VMEM scratch accumulator (roll across window edges needs care).

    kernel = functools.partial(_dsp_kernel, H=H, W=W, K=K, HW=HW)
    out = pl.pallas_call(
        kernel,
        out_shape=jax.ShapeDtypeStruct((N, dg, Cg_pad, P_pad), jnp.float32),
        grid=(N, dg, n_pt),
        in_specs=[
            pl.BlockSpec((None, None, 3, P_TILE, K), lambda n, g, t: (n, g, 0, t, 0)),
            pl.BlockSpec((None, None, Cg_pad, HW), lambda n, g, t: (n, g, 0, 0)),
        ],
        out_specs=pl.BlockSpec((None, None, Cg_pad, P_TILE),
                               lambda n, g, t: (n, g, 0, t)),
        compiler_params=pltpu.CompilerParams(
            dimension_semantics=("parallel", "parallel", "parallel"),
            vmem_limit_bytes=48 * 1024 * 1024),
    )(omm, x_r)
    out = out[:, :, :Cg, :P].reshape(N, C, Hout, Wout)
    return out


# -----------------------------------------------------------------------------
# DSP_sep2 forward
# -----------------------------------------------------------------------------
def dsp_sep2_forward(x, fea, w_om, b_om, *, kernel_size, stride, padding,
                     dilation=(1, 1), deformable_groups=1):
    kh, kw = kernel_size
    K = kh * kw
    dg = deformable_groups
    out_om = _conv2d_nchw(fea, w_om, b_om, stride, padding, dilation)
    o1 = out_om[:, :dg * K]
    o2 = out_om[:, dg * K:2 * dg * K]
    mask_raw = out_om[:, 2 * dg * K:]
    offset = jnp.concatenate([o1, o2], axis=1)
    _offset_mean = jnp.mean(jnp.abs(offset))
    # TODO(synk): value-dependent logger.warning(offset_mean > 100) is logging only; skipped.
    mask = jax.nn.sigmoid(mask_raw)
    out = dsp_v2_sample(x, offset, mask, kernel_size, stride, padding,
                        dilation, dg)
    return out, offset, mask


# -----------------------------------------------------------------------------
# pure numpy reference (same dsp_v2 semantics) for verification
# -----------------------------------------------------------------------------
def _ref_dsp_sample(x, offset, mask, kh, kw, sh, sw, ph, pw, dh, dw, dg):
    N, C, H, W = x.shape
    K = kh * kw
    Hout = (H + 2 * ph - (dh * (kh - 1) + 1)) // sh + 1
    Wout = (W + 2 * pw - (dw * (kw - 1) + 1)) // sw + 1
    Cg = C // dg
    out = np.zeros((N, C, Hout, Wout), np.float64)
    for n in range(N):
        for g in range(dg):
            for ho in range(Hout):
                for wo in range(Wout):
                    for ki in range(kh):
                        for kj in range(kw):
                            k = ki * kw + kj
                            oy = offset[n, g * 2 * K + 2 * k, ho, wo]
                            ox = offset[n, g * 2 * K + 2 * k + 1, ho, wo]
                            m = mask[n, g * K + k, ho, wo]
                            py = ho * sh - ph + ki * dh + oy
                            px = wo * sw - pw + kj * dw + ox
                            if not (py > -1 and px > -1 and py < H and px < W):
                                continue
                            hl = int(np.floor(py)); wl = int(np.floor(px))
                            hh_, wh_ = hl + 1, wl + 1
                            lh, lw = py - hl, px - wl
                            for c in range(Cg):
                                img = x[n, g * Cg + c]
                                v1 = img[hl, wl] if (hl >= 0 and wl >= 0) else 0.0
                                v2 = img[hl, wh_] if (hl >= 0 and wh_ <= W - 1) else 0.0
                                v3 = img[hh_, wl] if (hh_ <= H - 1 and wl >= 0) else 0.0
                                v4 = img[hh_, wh_] if (hh_ <= H - 1 and wh_ <= W - 1) else 0.0
                                val = ((1 - lh) * (1 - lw) * v1 + (1 - lh) * lw * v2
                                       + lh * (1 - lw) * v3 + lh * lw * v4)
                                out[n, g * Cg + c, ho, wo] += m * val
    return out.astype(np.float32)


if __name__ == "__main__":
    N, Cin, H, W = 2, 4, 16, 16
    kh = kw = 3
    stride = (1, 1)
    padding = (1, 1)
    dilation = (1, 1)
    dg = 1
    K = kh * kw

    key = jax.random.PRNGKey(0)
    kx, kf, kwk, kbk = jax.random.split(key, 4)
    x = jax.random.normal(kx, (N, Cin, H, W), jnp.float32)
    fea = jax.random.normal(kf, (N, Cin, H, W), jnp.float32)

    # conv_offset_mask params: shapes per nn.Conv2d(in_channels, dg*3*K, k, s, p).
    # The PyTorch module zero-inits them (init_offset); small deterministic random
    # values are used so the deformable path is actually exercised.
    ch_om = dg * 3 * K
    w_om = 0.1 * jax.random.normal(kwk, (ch_om, Cin, kh, kw), jnp.float32)
    b_om = 0.1 * jax.random.normal(kbk, (ch_om,), jnp.float32)

    out, offset, mask = dsp_sep2_forward(
        x, fea, w_om, b_om,
        kernel_size=(kh, kw), stride=stride, padding=padding,
        dilation=dilation, deformable_groups=dg)
    out = jax.block_until_ready(out)

    ref = _ref_dsp_sample(np.asarray(x), np.asarray(offset), np.asarray(mask),
                          kh, kw, stride[0], stride[1], padding[0], padding[1],
                          dilation[0], dilation[1], dg)
    np.testing.assert_allclose(np.asarray(out), ref, rtol=2e-2, atol=2e-2)
    print("KERNEL_OK")
</pallas_src>

<mosaic_0001>
module attributes {stable_mosaic.version = 11 : i64} {
  func.func @_mm_bias_kernel(%arg0: i32, %arg1: memref<512x36xf32, #tpu.memory_space<vmem>>, %arg2: memref<36x128xf32, #tpu.memory_space<vmem>>, %arg3: memref<1x128xf32, #tpu.memory_space<vmem>>, %arg4: memref<512x128xf32, #tpu.memory_space<vmem>>) attributes {dimension_semantics = [#tpu.dimension_semantics<parallel>], iteration_bounds = array<i64: 1>, scalar_prefetch = 0 : i64, scratch_operands = 0 : i64, tpu.core_type = #tpu.core_type<tc>, window_params = [{transform_indices = @transform_0, window_bounds = array<i64: 512, 36>}, {pipeline_mode = #tpu.pipeline_mode<synchronous>, transform_indices = @transform_1, window_bounds = array<i64: 36, 128>}, {pipeline_mode = #tpu.pipeline_mode<synchronous>, transform_indices = @transform_2, window_bounds = array<i64: 1, 128>}, {transform_indices = @transform_3, window_bounds = array<i64: 512, 128>}]} {
    %c0 = arith.constant 0 : index
    %c0_0 = arith.constant 0 : index
    %0 = vector.load %arg1[%c0, %c0_0] : memref<512x36xf32, #tpu.memory_space<vmem>>, vector<512x36xf32>
    %c0_1 = arith.constant 0 : index
    %c0_2 = arith.constant 0 : index
    %1 = vector.load %arg2[%c0_1, %c0_2] : memref<36x128xf32, #tpu.memory_space<vmem>>, vector<36x128xf32>
    %cst = arith.constant dense<0.000000e+00> : vector<512x128xf32>
    %2 = tpu.matmul %0, %1, %cst {dimension_numbers = #tpu.dot_dimension_numbers<[1], [0], [0], [1], [0, 0, 1, 1], [], []>} : vector<512x36xf32>, vector<36x128xf32>, vector<512x128xf32> -> vector<512x128xf32>
    %c0_3 = arith.constant 0 : index
    %c0_4 = arith.constant 0 : index
    %3 = vector.load %arg3[%c0_3, %c0_4] : memref<1x128xf32, #tpu.memory_space<vmem>>, vector<1x128xf32>
    %4 = vector.broadcast %3 : vector<1x128xf32> to vector<512x128xf32>
    %5 = arith.addf %2, %4 : vector<512x128xf32>
    %c0_5 = arith.constant 0 : index
    %c0_6 = arith.constant 0 : index
    %6 = vector.load %arg4[%c0_5, %c0_6] : memref<512x128xf32, #tpu.memory_space<vmem>>, vector<512x128xf32>
    tpu.vector_store %arg4[%c0_5, %c0_6], %5 {strides = array<i32>} : memref<512x128xf32, #tpu.memory_space<vmem>>, vector<512x128xf32>,
    return
  }
  func.func @transform_0(%arg0: i32) -> (i32, i32) {
    %c0_i32 = arith.constant 0 : i32
    %c0_i32_0 = arith.constant 0 : i32
    return %arg0, %c0_i32 : i32, i32
  }
  func.func @transform_1(%arg0: i32) -> (i32, i32) {
    %c0_i32 = arith.constant 0 : i32
    %c0_i32_0 = arith.constant 0 : i32
    %c0_i32_1 = arith.constant 0 : i32
    return %c0_i32, %c0_i32_0 : i32, i32
  }
  func.func @transform_2(%arg0: i32) -> (i32, i32) {
    %c0_i32 = arith.constant 0 : i32
    %c0_i32_0 = arith.constant 0 : i32
    %c0_i32_1 = arith.constant 0 : i32
    return %c0_i32, %c0_i32_0 : i32, i32
  }
  func.func @transform_3(%arg0: i32) -> (i32, i32) {
    %c0_i32 = arith.constant 0 : i32
    %c0_i32_0 = arith.constant 0 : i32
    return %arg0, %c0_i32 : i32, i32
  }
}

</mosaic_0001>

<llo_original>
// kernel: tpu_custom_call.1
$region0: #{tpu_custom_call.1}
  #allocation0 [shape = 'u32[]', space=smem, size = 0x4, offset = 0x4, fixed_abs, tag = 'smem constant byte address 0x4 - core index']
  #allocation1 [shape = 'u32[144,128]{1,0:T(1,128)}', space=vmem, size = 0x12000, scoped, tag = 'internal scratch']
  %s0 = inlined_call_operand.vmem [shape: f32[512,36], index: 0, kind: input, shape index: {}]
  %s1 = inlined_call_operand.vmem [shape: f32[36,128], index: 1, kind: input, shape index: {}]
  %s2 = inlined_call_operand.vmem [shape: f32[1,128], index: 2, kind: input, shape index: {}]
  %s3 = inlined_call_operand.hbm [shape: f32[512,128], index: 3, kind: output, shape index: {}]
  %s4 = sld [smem:[#allocation0]]
  $region22: #{tpu_custom_call.1} parent=0
    _
  %s6 = ssub.s32 1, %s4
  %s7 = scalar_select 0, %s6, %s4
  $region1: #{tpu_custom_call.1} parent=0
    #allocation2 [shape = 'u8[262144]{0}', space=vmem, size = 0x40000, scoped, tag = 'output window, operand 0, single buffered']
    #allocation3 [shape = 's32[1]{0}', space=sflag, size = 0x4, scoped, tag = 'scoped memory for tpu_custom_call.1']
    %8 = vsyncpa [#allocation3], 0
    // Predicated region
    $region2: #{tpu_custom_call.1} parent=1 // pred_check
      _
    $region3: #{tpu_custom_call.1} parent=1 // pred_check_branch
      %10 = sbr.rel (0) target = $region5
    $region4: #{tpu_custom_call.1} parent=1 // pred_region
      _
    $region5: #{tpu_custom_call.1} parent=1 // pred_fallthru
      _
    // Predicated region
    $region6: #{tpu_custom_call.1} parent=1 // pred_check
      _
    $region7: #{tpu_custom_call.1} parent=1 // pred_check_branch
      %12 = sbr.rel (0) target = $region9
    $region8: #{tpu_custom_call.1} parent=1 // pred_region
      _
    $region9: #{tpu_custom_call.1} parent=1 // pred_fallthru
      _
    // Predicated region
    $region10: #{tpu_custom_call.1} parent=1 // pred_check
      _
    $region11: #{tpu_custom_call.1} parent=1 // pred_check_branch
      %14 = sbr.rel (0) target = $region13
    $region12: #{tpu_custom_call.1} parent=1 // pred_region
      _
    $region13: #{tpu_custom_call.1} parent=1 // pred_fallthru
      _
    %v15 = vld [vmem:[%s0] sm:$0xff]
    %v16 = vld [vmem:[%s0 + $0x8] sm:$0xff]
    %v17 = vld [vmem:[%s0 + $0x10] sm:$0xff]
    %v18 = vld [vmem:[%s0 + $0x18] sm:$0xff]
    %v19 = vld [vmem:[%s0 + $0x20] sm:$0xff]
    %v20 = vld [vmem:[%s0 + $0x28] sm:$0xff]
    %v21 = vld [vmem:[%s0 + $0x30] sm:$0xff]
    %v22 = vld [vmem:[%s0 + $0x38] sm:$0xff]
    %v23 = vld [vmem:[%s0 + $0x40] sm:$0xff]
    %v24 = vld [vmem:[%s0 + $0x48] sm:$0xff]
    %v25 = vld [vmem:[%s0 + $0x50] sm:$0xff]
    %v26 = vld [vmem:[%s0 + $0x58] sm:$0xff]
    %v27 = vld [vmem:[%s0 + $0x60] sm:$0xff]
    %v28 = vld [vmem:[%s0 + $0x68] sm:$0xff]
    %v29 = vld [vmem:[%s0 + $0x70] sm:$0xff]
    %v30 = vld [vmem:[%s0 + $0x78] sm:$0xff]
    %v31 = vld [vmem:[%s0 + $0x80] sm:$0xff]
    %v32 = vld [vmem:[%s0 + $0x88] sm:$0xff]
    %v33 = vld [vmem:[%s0 + $0x90] sm:$0xff]
    %v34 = vld [vmem:[%s0 + $0x98] sm:$0xff]
    %v35 = vld [vmem:[%s0 + $0xa0] sm:$0xff]
    %v36 = vld [vmem:[%s0 + $0xa8] sm:$0xff]
    %v37 = vld [vmem:[%s0 + $0xb0] sm:$0xff]
    %v38 = vld [vmem:[%s0 + $0xb8] sm:$0xff]
    %v39 = vld [vmem:[%s0 + $0xc0] sm:$0xff]
    %v40 = vld [vmem:[%s0 + $0xc8] sm:$0xff]
    %v41 = vld [vmem:[%s0 + $0xd0] sm:$0xff]
    %v42 = vld [vmem:[%s0 + $0xd8] sm:$0xff]
    %v43 = vld [vmem:[%s0 + $0xe0] sm:$0xff]
    %v44 = vld [vmem:[%s0 + $0xe8] sm:$0xff]
    %v45 = vld [vmem:[%s0 + $0xf0] sm:$0xff]
    %v46 = vld [vmem:[%s0 + $0xf8] sm:$0xff]
    %v47 = vld [vmem:[%s0 + $0x100] sm:$0xff]
    %v48 = vld [vmem:[%s0 + $0x108] sm:$0xff]
    %v49 = vld [vmem:[%s0 + $0x110] sm:$0xff]
    %v50 = vld [vmem:[%s0 + $0x118] sm:$0xff]
    %v51 = vld [vmem:[%s0 + $0x120] sm:$0xff]
    %v52 = vld [vmem:[%s0 + $0x128] sm:$0xff]
    %v53 = vld [vmem:[%s0 + $0x130] sm:$0xff]
    %v54 = vld [vmem:[%s0 + $0x138] sm:$0xff]
    %v55 = vld [vmem:[%s0 + $0x140] sm:$0xff]
    %v56 = vld [vmem:[%s0 + $0x148] sm:$0xff]
    %v57 = vld [vmem:[%s0 + $0x150] sm:$0xff]
    %v58 = vld [vmem:[%s0 + $0x158] sm:$0xff]
    %v59 = vld [vmem:[%s0 + $0x160] sm:$0xff]
    %v60 = vld [vmem:[%s0 + $0x168] sm:$0xff]
    %v61 = vld [vmem:[%s0 + $0x170] sm:$0xff]
    %v62 = vld [vmem:[%s0 + $0x178] sm:$0xff]
    %v63 = vld [vmem:[%s0 + $0x180] sm:$0xff]
    %v64 = vld [vmem:[%s0 + $0x188] sm:$0xff]
    %v65 = vld [vmem:[%s0 + $0x190] sm:$0xff]
    %v66 = vld [vmem:[%s0 + $0x198] sm:$0xff]
    %v67 = vld [vmem:[%s0 + $0x1a0] sm:$0xff]
    %v68 = vld [vmem:[%s0 + $0x1a8] sm:$0xff]
    %v69 = vld [vmem:[%s0 + $0x1b0] sm:$0xff]
    %v70 = vld [vmem:[%s0 + $0x1b8] sm:$0xff]
    %v71 = vld [vmem:[%s0 + $0x1c0] sm:$0xff]
    %v72 = vld [vmem:[%s0 + $0x1c8] sm:$0xff]
    %v73 = vld [vmem:[%s0 + $0x1d0] sm:$0xff]
    %v74 = vld [vmem:[%s0 + $0x1d8] sm:$0xff]
    %v75 = vld [vmem:[%s0 + $0x1e0] sm:$0xff]
    %v76 = vld [vmem:[%s0 + $0x1e8] sm:$0xff]
    %v77 = vld [vmem:[%s0 + $0x1f0] sm:$0xff]
    %v78 = vld [vmem:[%s0 + $0x1f8] sm:$0xff]
    %v79 = vld [vmem:[%s1] sm:$0xff]
    %v80 = vld [vmem:[%s1 + $0x8] sm:$0xff]
    %v81 = vld [vmem:[%s1 + $0x10] sm:$0xff]
    %v82 = vld [vmem:[%s1 + $0x18] sm:$0xff]
    %v83 = vld [vmem:[%s1 + $0x20] sm:$0xf]
    %v84 = vld [vmem:[%s2] sm:$0x1]
    %v86 = vlaneseq
    %v87 = vshrl.u32 %v86, 7
    %v88 = vsub.s32 0, %v87
    %v89 = vrot.slane %v84, %v88
    %vm91 = vcmask 293888
    %v93 = vsel %vm91, %v15, 0
    %v96 = vsel %vm91, %v16, 0
    %v99 = vsel %vm91, %v17, 0
    %v102 = vsel %vm91, %v18, 0
    %v105 = vsel %vm91, %v19, 0
    %v108 = vsel %vm91, %v20, 0
    %v111 = vsel %vm91, %v21, 0
    %v114 = vsel %vm91, %v22, 0
    %v117 = vsel %vm91, %v23, 0
    %v120 = vsel %vm91, %v24, 0
    %v123 = vsel %vm91, %v25, 0
    %v126 = vsel %vm91, %v26, 0
    %v129 = vsel %vm91, %v27, 0
    %v132 = vsel %vm91, %v28, 0
    %v135 = vsel %vm91, %v29, 0
    %v138 = vsel %vm91, %v30, 0
    %v141 = vsel %vm91, %v31, 0
    %v144 = vsel %vm91, %v32, 0
    %v147 = vsel %vm91, %v33, 0
    %v150 = vsel %vm91, %v34, 0
    %v153 = vsel %vm91, %v35, 0
    %v156 = vsel %vm91, %v36, 0
    %v159 = vsel %vm91, %v37, 0
    %v162 = vsel %vm91, %v38, 0
    %v165 = vsel %vm91, %v39, 0
    %v168 = vsel %vm91, %v40, 0
    %v171 = vsel %vm91, %v41, 0
    %v174 = vsel %vm91, %v42, 0
    %v177 = vsel %vm91, %v43, 0
    %v180 = vsel %vm91, %v44, 0
    %v183 = vsel %vm91, %v45, 0
    %v186 = vsel %vm91, %v46, 0
    %v189 = vsel %vm91, %v47, 0
    %v192 = vsel %vm91, %v48, 0
    %v195 = vsel %vm91, %v49, 0
    %v198 = vsel %vm91, %v50, 0
    %v201 = vsel %vm91, %v51, 0
    %v204 = vsel %vm91, %v52, 0
    %v207 = vsel %vm91, %v53, 0
    %v210 = vsel %vm91, %v54, 0
    %v213 = vsel %vm91, %v55, 0
    %v216 = vsel %vm91, %v56, 0
    %v219 = vsel %vm91, %v57, 0
    %v222 = vsel %vm91, %v58, 0
    %v225 = vsel %vm91, %v59, 0
    %v228 = vsel %vm91, %v60, 0
    %v231 = vsel %vm91, %v61, 0
    %v234 = vsel %vm91, %v62, 0
    %v237 = vsel %vm91, %v63, 0
    %v240 = vsel %vm91, %v64, 0
    %v243 = vsel %vm91, %v65, 0
    %v246 = vsel %vm91, %v66, 0
    %v249 = vsel %vm91, %v67, 0
    %v252 = vsel %vm91, %v68, 0
    %v255 = vsel %vm91, %v69, 0
    %v258 = vsel %vm91, %v70, 0
    %v261 = vsel %vm91, %v71, 0
    %v264 = vsel %vm91, %v72, 0
    %v267 = vsel %vm91, %v73, 0
    %v270 = vsel %vm91, %v74, 0
    %v273 = vsel %vm91, %v75, 0
    %v276 = vsel %vm91, %v76, 0
    %v279 = vsel %vm91, %v77, 0
    %v282 = vsel %vm91, %v78, 0
    %vm284 = vcmask 1043456
    %v286 = vsel %vm284, %v83, 0
    %288 = vmatprep.subr.mxu0 0.0
    %289 = vmatpush1.msra.mxu0 %v79
    %290 = vmatprep.subr.mxu0 0.0
    %291 = vmatpush1.msra.mxu0 %v80
    %292 = vmatprep.subr.mxu0 0.0
    %293 = vmatpush1.msra.mxu0 %v81
    %294 = vmatprep.subr.mxu0 0.0
    %295 = vmatpush1.msra.mxu0 %v82
    %296 = vmatprep.subr.mxu0 0.0
    %297 = vmatpush1.msra.mxu0 %v286
    %298 = vmatprep.subr.mxu0 0.0
    %299 = vmatpush1.msra.mxu0 0.0
    %300 = vmatprep.subr.mxu0 0.0
    %301 = vmatpush1.msra.mxu0 0.0
    %302 = vmatprep.subr.mxu0 0.0
    %303 = vmatpush1.msra.mxu0 0.0
    %304 = vmatprep.subr.mxu0 0.0
    %305 = vmatpush1.msra.mxu0 0.0
    %306 = vmatprep.subr.mxu0 0.0
    %307 = vmatpush1.msra.mxu0 0.0
    %308 = vmatprep.subr.mxu0 0.0
    %309 = vmatpush1.msra.mxu0 0.0
    %310 = vmatprep.subr.mxu0 0.0
    %311 = vmatpush1.msra.mxu0 0.0
    %312 = vmatprep.subr.mxu0 0.0
    %313 = vmatpush1.msra.mxu0 0.0
    %314 = vmatprep.subr.mxu0 0.0
    %315 = vmatpush1.msra.mxu0 0.0
    %316 = vmatprep.subr.mxu0 0.0
    %317 = vmatpush1.msra.mxu0 0.0
    %318 = vmatprep.subr.mxu0 0.0
    %319 = vmatpush1.msra.mxu0 0.0
    %320 = vmatprep.subr.mxu0 0.0
    %321 = vmatpush1.msra.mxu0 0.0
    %322 = vmatprep.subr.mxu0 0.0
    %323 = vmatpush1.msra.mxu0 0.0
    %324 = vmatprep.subr.mxu0 0.0
    %325 = vmatpush1.msra.mxu0 0.0
    %326 = vmatprep.subr.mxu0 0.0
    %327 = vmatpush1.msra.mxu0 0.0
    %328 = vmatprep.subr.mxu0 0.0
    %329 = vmatpush1.msra.mxu0 0.0
    %330 = vmatprep.subr.mxu0 0.0
    %331 = vmatpush1.msra.mxu0 0.0
    %332 = vmatprep.subr.mxu0 0.0
    %333 = vmatpush1.msra.mxu0 0.0
    %334 = vmatprep.subr.mxu0 0.0
    %335 = vmatpush1.msra.mxu0 0.0
    %336 = vmatprep.subr.mxu0 0.0
    %337 = vmatpush1.msra.mxu0 0.0
    %338 = vmatprep.subr.mxu0 0.0
    %339 = vmatpush1.msra.mxu0 0.0
    %340 = vmatprep.subr.mxu0 0.0
    %341 = vmatpush1.msra.mxu0 0.0
    %342 = vmatprep.subr.mxu0 0.0
    %343 = vmatpush1.msra.mxu0 0.0
    %344 = vmatprep.subr.mxu0 0.0
    %345 = vmatpush1.msra.mxu0 0.0
    %346 = vmatprep.subr.mxu0 0.0
    %347 = vmatpush1.msra.mxu0 0.0
    %348 = vmatprep.subr.mxu0 0.0
    %349 = vmatpush1.msra.mxu0 0.0
    %350 = vmatprep.subr.mxu0 0.0
    %351 = vmatpush1.msra.mxu0 0.0
    %352 = vmatprep.mubr.f32.mxu0 0.0
    %353 = vmatmul.mubr.f32.gmra.mrb[0].mxu0 %v93
    %v354 = vpop.f32.mrb[0].mxu0
    %v355 = vadd.f32 %v89, %v354
    %v356 = vpop.f32.mrb[0].mxu0
    %357 = vmatprep.mubr.f32.mxu0 0.0
    %358 = vmatmul.mubr.f32.gmra.mrb[0].mxu0 %v96
    %v359 = vpop.f32.mrb[0].mxu0
    %v360 = vadd.f32 %v89, %v359
    %v361 = vpop.f32.mrb[0].mxu0
    %362 = vmatprep.mubr.f32.mxu0 0.0
    %363 = vmatmul.mubr.f32.gmra.mrb[0].mxu0 %v99
    %v364 = vpop.f32.mrb[0].mxu0
    %v365 = vadd.f32 %v89, %v364
    %v366 = vpop.f32.mrb[0].mxu0
    %367 = vmatprep.mubr.f32.mxu0 0.0
    %368 = vmatmul.mubr.f32.gmra.mrb[0].mxu0 %v102
    %v369 = vpop.f32.mrb[0].mxu0
    %v370 = vadd.f32 %v89, %v369
    %v371 = vpop.f32.mrb[0].mxu0
    %372 = vmatprep.mubr.f32.mxu0 0.0
    %373 = vmatmul.mubr.f32.gmra.mrb[0].mxu0 %v105
    %v374 = vpop.f32.mrb[0].mxu0
    %v375 = vadd.f32 %v89, %v374
    %v376 = vpop.f32.mrb[0].mxu0
    %377 = vmatprep.mubr.f32.mxu0 0.0
    %378 = vmatmul.mubr.f32.gmra.mrb[0].mxu0 %v108
    %v379 = vpop.f32.mrb[0].mxu0
    %v380 = vadd.f32 %v89, %v379
    %v381 = vpop.f32.mrb[0].mxu0
    %382 = vmatprep.mubr.f32.mxu0 0.0
    %383 = vmatmul.mubr.f32.gmra.mrb[0].mxu0 %v111
    %v384 = vpop.f32.mrb[0].mxu0
    %v385 = vadd.f32 %v89, %v384
    %v386 = vpop.f32.mrb[0].mxu0
    %387 = vmatprep.mubr.f32.mxu0 0.0
    %388 = vmatmul.mubr.f32.gmra.mrb[0].mxu0 %v114
    %v389 = vpop.f32.mrb[0].mxu0
    %v390 = vadd.f32 %v89, %v389
    %v391 = vpop.f32.mrb[0].mxu0
    %392 = vmatprep.mubr.f32.mxu0 0.0
    %393 = vmatmul.mubr.f32.gmra.mrb[0].mxu0 %v117
    %v394 = vpop.f32.mrb[0].mxu0
    %v395 = vadd.f32 %v89, %v394
    %v396 = vpop.f32.mrb[0].mxu0
    %397 = vmatprep.mubr.f32.mxu0 0.0
    %398 = vmatmul.mubr.f32.gmra.mrb[0].mxu0 %v120
    %v399 = vpop.f32.mrb[0].mxu0
    %v400 = vadd.f32 %v89, %v399
    %v401 = vpop.f32.mrb[0].mxu0
    %402 = vmatprep.mubr.f32.mxu0 0.0
    %403 = vmatmul.mubr.f32.gmra.mrb[0].mxu0 %v123
    %v404 = vpop.f32.mrb[0].mxu0
    %v405 = vadd.f32 %v89, %v404
    %v406 = vpop.f32.mrb[0].mxu0
    %407 = vmatprep.mubr.f32.mxu0 0.0
    %408 = vmatmul.mubr.f32.gmra.mrb[0].mxu0 %v126
    %v409 = vpop.f32.mrb[0].mxu0
    %v410 = vadd.f32 %v89, %v409
    %v411 = vpop.f32.mrb[0].mxu0
    %412 = vmatprep.mubr.f32.mxu0 0.0
    %413 = vmatmul.mubr.f32.gmra.mrb[0].mxu0 %v129
    %v414 = vpop.f32.mrb[0].mxu0
    %v415 = vadd.f32 %v89, %v414
    %v416 = vpop.f32.mrb[0].mxu0
    %417 = vmatprep.mubr.f32.mxu0 0.0
    %418 = vmatmul.mubr.f32.gmra.mrb[0].mxu0 %v132
    %v419 = vpop.f32.mrb[0].mxu0
    %v420 = vadd.f32 %v89, %v419
    %v421 = vpop.f32.mrb[0].mxu0
    %422 = vmatprep.mubr.f32.mxu0 0.0
    %423 = vmatmul.mubr.f32.gmra.mrb[0].mxu0 %v135
    %v424 = vpop.f32.mrb[0].mxu0
    %v425 = vadd.f32 %v89, %v424
    %v426 = vpop.f32.mrb[0].mxu0
    %427 = vmatprep.mubr.f32.mxu0 0.0
    %428 = vmatmul.mubr.f32.gmra.mrb[0].mxu0 %v138
    %v429 = vpop.f32.mrb[0].mxu0
    %v430 = vadd.f32 %v89, %v429
    %v431 = vpop.f32.mrb[0].mxu0
    %432 = vmatprep.mubr.f32.mxu0 0.0
    %433 = vmatmul.mubr.f32.gmra.mrb[0].mxu0 %v141
    %v434 = vpop.f32.mrb[0].mxu0
    %v435 = vadd.f32 %v89, %v434
    %v436 = vpop.f32.mrb[0].mxu0
    %437 = vmatprep.mubr.f32.mxu0 0.0
    %438 = vmatmul.mubr.f32.gmra.mrb[0].mxu0 %v144
    %v439 = vpop.f32.mrb[0].mxu0
    %v440 = vadd.f32 %v89, %v439
    %v441 = vpop.f32.mrb[0].mxu0
    %442 = vmatprep.mubr.f32.mxu0 0.0
    %443 = vmatmul.mubr.f32.gmra.mrb[0].mxu0 %v147
    %v444 = vpop.f32.mrb[0].mxu0
    %v445 = vadd.f32 %v89, %v444
    %v446 = vpop.f32.mrb[0].mxu0
    %447 = vmatprep.mubr.f32.mxu0 0.0
    %448 = vmatmul.mubr.f32.gmra.mrb[0].mxu0 %v150
    %v449 = vpop.f32.mrb[0].mxu0
    %v450 = vadd.f32 %v89, %v449
    %v451 = vpop.f32.mrb[0].mxu0
    %452 = vmatprep.mubr.f32.mxu0 0.0
    %453 = vmatmul.mubr.f32.gmra.mrb[0].mxu0 %v153
    %v454 = vpop.f32.mrb[0].mxu0
    %v455 = vadd.f32 %v89, %v454
    %v456 = vpop.f32.mrb[0].mxu0
    %457 = vmatprep.mubr.f32.mxu0 0.0
    %458 = vmatmul.mubr.f32.gmra.mrb[0].mxu0 %v156
    %v459 = vpop.f32.mrb[0].mxu0
    %v460 = vadd.f32 %v89, %v459
    %v461 = vpop.f32.mrb[0].mxu0
    %462 = vmatprep.mubr.f32.mxu0 0.0
    %463 = vmatmul.mubr.f32.gmra.mrb[0].mxu0 %v159
    %v464 = vpop.f32.mrb[0].mxu0
    %v465 = vadd.f32 %v89, %v464
    %v466 = vpop.f32.mrb[0].mxu0
    %467 = vmatprep.mubr.f32.mxu0 0.0
    %468 = vmatmul.mubr.f32.gmra.mrb[0].mxu0 %v162
    %v469 = vpop.f32.mrb[0].mxu0
    %v470 = vadd.f32 %v89, %v469
    %v471 = vpop.f32.mrb[0].mxu0
    %472 = vmatprep.mubr.f32.mxu0 0.0
    %473 = vmatmul.mubr.f32.gmra.mrb[0].mxu0 %v165
    %v474 = vpop.f32.mrb[0].mxu0
    %v475 = vadd.f32 %v89, %v474
    %v476 = vpop.f32.mrb[0].mxu0
    %477 = vmatprep.mubr.f32.mxu0 0.0
    %478 = vmatmul.mubr.f32.gmra.mrb[0].mxu0 %v168
    %v479 = vpop.f32.mrb[0].mxu0
    %v480 = vadd.f32 %v89, %v479
    %v481 = vpop.f32.mrb[0].mxu0
    %482 = vmatprep.mubr.f32.mxu0 0.0
    %483 = vmatmul.mubr.f32.gmra.mrb[0].mxu0 %v171
    %v484 = vpop.f32.mrb[0].mxu0
    %v485 = vadd.f32 %v89, %v484
    %v486 = vpop.f32.mrb[0].mxu0
    %487 = vmatprep.mubr.f32.mxu0 0.0
    %488 = vmatmul.mubr.f32.gmra.mrb[0].mxu0 %v174
    %v489 = vpop.f32.mrb[0].mxu0
    %v490 = vadd.f32 %v89, %v489
    %v491 = vpop.f32.mrb[0].mxu0
    %492 = vmatprep.mubr.f32.mxu0 0.0
    %493 = vmatmul.mubr.f32.gmra.mrb[0].mxu0 %v177
    %v494 = vpop.f32.mrb[0].mxu0
    %v495 = vadd.f32 %v89, %v494
    %v496 = vpop.f32.mrb[0].mxu0
    %497 = vmatprep.mubr.f32.mxu0 0.0
    %498 = vmatmul.mubr.f32.gmra.mrb[0].mxu0 %v180
    %v499 = vpop.f32.mrb[0].mxu0
    %v500 = vadd.f32 %v89, %v499
    %v501 = vpop.f32.mrb[0].mxu0
    %502 = vmatprep.mubr.f32.mxu0 0.0
    %503 = vmatmul.mubr.f32.gmra.mrb[0].mxu0 %v183
    %v504 = vpop.f32.mrb[0].mxu0
    %v505 = vadd.f32 %v89, %v504
    %v506 = vpop.f32.mrb[0].mxu0
    %507 = vmatprep.mubr.f32.mxu0 0.0
    %508 = vmatmul.mubr.f32.gmra.mrb[0].mxu0 %v186
    %v509 = vpop.f32.mrb[0].mxu0
    %v510 = vadd.f32 %v89, %v509
    %v511 = vpop.f32.mrb[0].mxu0
    %512 = vmatprep.mubr.f32.mxu0 0.0
    %513 = vmatmul.mubr.f32.gmra.mrb[0].mxu0 %v189
    %v514 = vpop.f32.mrb[0].mxu0
    %v515 = vadd.f32 %v89, %v514
    %v516 = vpop.f32.mrb[0].mxu0
    %517 = vmatprep.mubr.f32.mxu0 0.0
    %518 = vmatmul.mubr.f32.gmra.mrb[0].mxu0 %v192
    %v519 = vpop.f32.mrb[0].mxu0
    %v520 = vadd.f32 %v89, %v519
    %v521 = vpop.f32.mrb[0].mxu0
    %522 = vmatprep.mubr.f32.mxu0 0.0
    %523 = vmatmul.mubr.f32.gmra.mrb[0].mxu0 %v195
    %v524 = vpop.f32.mrb[0].mxu0
    %v525 = vadd.f32 %v89, %v524
    %v526 = vpop.f32.mrb[0].mxu0
    %527 = vmatprep.mubr.f32.mxu0 0.0
    %528 = vmatmul.mubr.f32.gmra.mrb[0].mxu0 %v198
    %v529 = vpop.f32.mrb[0].mxu0
    %v530 = vadd.f32 %v89, %v529
    %v531 = vpop.f32.mrb[0].mxu0
    %532 = vmatprep.mubr.f32.mxu0 0.0
    %533 = vmatmul.mubr.f32.gmra.mrb[0].mxu0 %v201
    %v534 = vpop.f32.mrb[0].mxu0
    %v535 = vadd.f32 %v89, %v534
    %v536 = vpop.f32.mrb[0].mxu0
    %537 = vmatprep.mubr.f32.mxu0 0.0
    %538 = vmatmul.mubr.f32.gmra.mrb[0].mxu0 %v204
    %v539 = vpop.f32.mrb[0].mxu0
    %v540 = vadd.f32 %v89, %v539
    %v541 = vpop.f32.mrb[0].mxu0
    %542 = vmatprep.mubr.f32.mxu0 0.0
    %543 = vmatmul.mubr.f32.gmra.mrb[0].mxu0 %v207
    %v544 = vpop.f32.mrb[0].mxu0
    %v545 = vadd.f32 %v89, %v544
    %v546 = vpop.f32.mrb[0].mxu0
    %547 = vmatprep.mubr.f32.mxu0 0.0
    %548 = vmatmul.mubr.f32.gmra.mrb[0].mxu0 %v210
    %v549 = vpop.f32.mrb[0].mxu0
    %v550 = vadd.f32 %v89, %v549
    %v551 = vpop.f32.mrb[0].mxu0
    %552 = vmatprep.mubr.f32.mxu0 0.0
    %553 = vmatmul.mubr.f32.gmra.mrb[0].mxu0 %v213
    %v554 = vpop.f32.mrb[0].mxu0
    %v555 = vadd.f32 %v89, %v554
    %v556 = vpop.f32.mrb[0].mxu0
    %557 = vmatprep.mubr.f32.mxu0 0.0
    %558 = vmatmul.mubr.f32.gmra.mrb[0].mxu0 %v216
    %v559 = vpop.f32.mrb[0].mxu0
    %v560 = vadd.f32 %v89, %v559
    %v561 = vpop.f32.mrb[0].mxu0
    %562 = vmatprep.mubr.f32.mxu0 0.0
    %563 = vmatmul.mubr.f32.gmra.mrb[0].mxu0 %v219
    %v564 = vpop.f32.mrb[0].mxu0
    %v565 = vadd.f32 %v89, %v564
    %v566 = vpop.f32.mrb[0].mxu0
    %567 = vmatprep.mubr.f32.mxu0 0.0
    %568 = vmatmul.mubr.f32.gmra.mrb[0].mxu0 %v222
    %v569 = vpop.f32.mrb[0].mxu0
    %v570 = vadd.f32 %v89, %v569
    %v571 = vpop.f32.mrb[0].mxu0
    %572 = vmatprep.mubr.f32.mxu0 0.0
    %573 = vmatmul.mubr.f32.gmra.mrb[0].mxu0 %v225
    %v574 = vpop.f32.mrb[0].mxu0
    %v575 = vadd.f32 %v89, %v574
    %v576 = vpop.f32.mrb[0].mxu0
    %577 = vmatprep.mubr.f32.mxu0 0.0
    %578 = vmatmul.mubr.f32.gmra.mrb[0].mxu0 %v228
    %v579 = vpop.f32.mrb[0].mxu0
    %v580 = vadd.f32 %v89, %v579
    %v581 = vpop.f32.mrb[0].mxu0
    %582 = vmatprep.mubr.f32.mxu0 0.0
    %583 = vmatmul.mubr.f32.gmra.mrb[0].mxu0 %v231
    %v584 = vpop.f32.mrb[0].mxu0
    %v585 = vadd.f32 %v89, %v584
    %v586 = vpop.f32.mrb[0].mxu0
    %587 = vmatprep.mubr.f32.mxu0 0.0
    %588 = vmatmul.mubr.f32.gmra.mrb[0].mxu0 %v234
    %v589 = vpop.f32.mrb[0].mxu0
    %v590 = vadd.f32 %v89, %v589
    %v591 = vpop.f32.mrb[0].mxu0
    %592 = vmatprep.mubr.f32.mxu0 0.0
    %593 = vmatmul.mubr.f32.gmra.mrb[0].mxu0 %v237
    %v594 = vpop.f32.mrb[0].mxu0
    %v595 = vadd.f32 %v89, %v594
    %v596 = vpop.f32.mrb[0].mxu0
    %597 = vmatprep.mubr.f32.mxu0 0.0
    %598 = vmatmul.mubr.f32.gmra.mrb[0].mxu0 %v240
    %v599 = vpop.f32.mrb[0].mxu0
    %v600 = vadd.f32 %v89, %v599
    %v601 = vpop.f32.mrb[0].mxu0
    %602 = vmatprep.mubr.f32.mxu0 0.0
    %603 = vmatmul.mubr.f32.gmra.mrb[0].mxu0 %v243
    %v604 = vpop.f32.mrb[0].mxu0
    %v605 = vadd.f32 %v89, %v604
    %v606 = vpop.f32.mrb[0].mxu0
    %607 = vmatprep.mubr.f32.mxu0 0.0
    %608 = vmatmul.mubr.f32.gmra.mrb[0].mxu0 %v246
    %v609 = vpop.f32.mrb[0].mxu0
    %v610 = vadd.f32 %v89, %v609
    %v611 = vpop.f32.mrb[0].mxu0
    %612 = vmatprep.mubr.f32.mxu0 0.0
    %613 = vmatmul.mubr.f32.gmra.mrb[0].mxu0 %v249
    %v614 = vpop.f32.mrb[0].mxu0
    %v615 = vadd.f32 %v89, %v614
    %v616 = vpop.f32.mrb[0].mxu0
    %617 = vmatprep.mubr.f32.mxu0 0.0
    %618 = vmatmul.mubr.f32.gmra.mrb[0].mxu0 %v252
    %v619 = vpop.f32.mrb[0].mxu0
    %v620 = vadd.f32 %v89, %v619
    %v621 = vpop.f32.mrb[0].mxu0
    %622 = vmatprep.mubr.f32.mxu0 0.0
    %623 = vmatmul.mubr.f32.gmra.mrb[0].mxu0 %v255
    %v624 = vpop.f32.mrb[0].mxu0
    %v625 = vadd.f32 %v89, %v624
    %v626 = vpop.f32.mrb[0].mxu0
    %627 = vmatprep.mubr.f32.mxu0 0.0
    %628 = vmatmul.mubr.f32.gmra.mrb[0].mxu0 %v258
    %v629 = vpop.f32.mrb[0].mxu0
    %v630 = vadd.f32 %v89, %v629
    %v631 = vpop.f32.mrb[0].mxu0
    %632 = vmatprep.mubr.f32.mxu0 0.0
    %633 = vmatmul.mubr.f32.gmra.mrb[0].mxu0 %v261
    %v634 = vpop.f32.mrb[0].mxu0
    %v635 = vadd.f32 %v89, %v634
    %v636 = vpop.f32.mrb[0].mxu0
    %637 = vmatprep.mubr.f32.mxu0 0.0
    %638 = vmatmul.mubr.f32.gmra.mrb[0].mxu0 %v264
    %v639 = vpop.f32.mrb[0].mxu0
    %v640 = vadd.f32 %v89, %v639
    %v641 = vpop.f32.mrb[0].mxu0
    %642 = vmatprep.mubr.f32.mxu0 0.0
    %643 = vmatmul.mubr.f32.gmra.mrb[0].mxu0 %v267
    %v644 = vpop.f32.mrb[0].mxu0
    %v645 = vadd.f32 %v89, %v644
    %v646 = vpop.f32.mrb[0].mxu0
    %647 = vmatprep.mubr.f32.mxu0 0.0
    %648 = vmatmul.mubr.f32.gmra.mrb[0].mxu0 %v270
    %v649 = vpop.f32.mrb[0].mxu0
    %v650 = vadd.f32 %v89, %v649
    %v651 = vpop.f32.mrb[0].mxu0
    %652 = vmatprep.mubr.f32.mxu0 0.0
    %653 = vmatmul.mubr.f32.gmra.mrb[0].mxu0 %v273
    %v654 = vpop.f32.mrb[0].mxu0
    %v655 = vadd.f32 %v89, %v654
    %v656 = vpop.f32.mrb[0].mxu0
    %657 = vmatprep.mubr.f32.mxu0 0.0
    %658 = vmatmul.mubr.f32.gmra.mrb[0].mxu0 %v276
    %v659 = vpop.f32.mrb[0].mxu0
    %v660 = vadd.f32 %v89, %v659
    %v661 = vpop.f32.mrb[0].mxu0
    %662 = vmatprep.mubr.f32.mxu0 0.0
    %663 = vmatmul.mubr.f32.gmra.mrb[0].mxu0 %v279
    %v664 = vpop.f32.mrb[0].mxu0
    %v665 = vadd.f32 %v89, %v664
    %v666 = vpop.f32.mrb[0].mxu0
    %667 = vmatprep.mubr.f32.mxu0 0.0
    %668 = vmatmul.mubr.f32.gmra.mrb[0].mxu0 %v282
    %v669 = vpop.f32.mrb[0].mxu0
    %v670 = vadd.f32 %v89, %v669
    %v671 = vpop.f32.mrb[0].mxu0
    %672 = vdwg.mxu0
    %673 = vst [vmem:[#allocation2] sm:$0xff] %v355
    %674 = vst [vmem:[#allocation2 + $0x8] sm:$0xff] %v360
    %675 = vst [vmem:[#allocation2 + $0x10] sm:$0xff] %v365
    %676 = vst [vmem:[#allocation2 + $0x18] sm:$0xff] %v370
    %677 = vst [vmem:[#allocation2 + $0x20] sm:$0xff] %v375
    %678 = vst [vmem:[#allocation2 + $0x28] sm:$0xff] %v380
    %679 = vst [vmem:[#allocation2 + $0x30] sm:$0xff] %v385
    %680 = vst [vmem:[#allocation2 + $0x38] sm:$0xff] %v390
    %681 = vst [vmem:[#allocation2 + $0x40] sm:$0xff] %v395
    %682 = vst [vmem:[#allocation2 + $0x48] sm:$0xff] %v400
    %683 = vst [vmem:[#allocation2 + $0x50] sm:$0xff] %v405
    %684 = vst [vmem:[#allocation2 + $0x58] sm:$0xff] %v410
    %685 = vst [vmem:[#allocation2 + $0x60] sm:$0xff] %v415
    %686 = vst [vmem:[#allocation2 + $0x68] sm:$0xff] %v420
    %687 = vst [vmem:[#allocation2 + $0x70] sm:$0xff] %v425
    %688 = vst [vmem:[#allocation2 + $0x78] sm:$0xff] %v430
    %689 = vst [vmem:[#allocation2 + $0x80] sm:$0xff] %v435
    %690 = vst [vmem:[#allocation2 + $0x88] sm:$0xff] %v440
    %691 = vst [vmem:[#allocation2 + $0x90] sm:$0xff] %v445
    %692 = vst [vmem:[#allocation2 + $0x98] sm:$0xff] %v450
    %693 = vst [vmem:[#allocation2 + $0xa0] sm:$0xff] %v455
    %694 = vst [vmem:[#allocation2 + $0xa8] sm:$0xff] %v460
    %695 = vst [vmem:[#allocation2 + $0xb0] sm:$0xff] %v465
    %696 = vst [vmem:[#allocation2 + $0xb8] sm:$0xff] %v470
    %697 = vst [vmem:[#allocation2 + $0xc0] sm:$0xff] %v475
    %698 = vst [vmem:[#allocation2 + $0xc8] sm:$0xff] %v480
    %699 = vst [vmem:[#allocation2 + $0xd0] sm:$0xff] %v485
    %700 = vst [vmem:[#allocation2 + $0xd8] sm:$0xff] %v490
    %701 = vst [vmem:[#allocation2 + $0xe0] sm:$0xff] %v495
    %702 = vst [vmem:[#allocation2 + $0xe8] sm:$0xff] %v500
    %703 = vst [vmem:[#allocation2 + $0xf0] sm:$0xff] %v505
    %704 = vst [vmem:[#allocation2 + $0xf8] sm:$0xff] %v510
    %705 = vst [vmem:[#allocation2 + $0x100] sm:$0xff] %v515
    %706 = vst [vmem:[#allocation2 + $0x108] sm:$0xff] %v520
    %707 = vst [vmem:[#allocation2 + $0x110] sm:$0xff] %v525
    %708 = vst [vmem:[#allocation2 + $0x118] sm:$0xff] %v530
    %709 = vst [vmem:[#allocation2 + $0x120] sm:$0xff] %v535
    %710 = vst [vmem:[#allocation2 + $0x128] sm:$0xff] %v540
    %711 = vst [vmem:[#allocation2 + $0x130] sm:$0xff] %v545
    %712 = vst [vmem:[#allocation2 + $0x138] sm:$0xff] %v550
    %713 = vst [vmem:[#allocation2 + $0x140] sm:$0xff] %v555
    %714 = vst [vmem:[#allocation2 + $0x148] sm:$0xff] %v560
    %715 = vst [vmem:[#allocation2 + $0x150] sm:$0xff] %v565
    %716 = vst [vmem:[#allocation2 + $0x158] sm:$0xff] %v570
    %717 = vst [vmem:[#allocation2 + $0x160] sm:$0xff] %v575
    %718 = vst [vmem:[#allocation2 + $0x168] sm:$0xff] %v580
    %719 = vst [vmem:[#allocation2 + $0x170] sm:$0xff] %v585
    %720 = vst [vmem:[#allocation2 + $0x178] sm:$0xff] %v590
    %721 = vst [vmem:[#allocation2 + $0x180] sm:$0xff] %v595
    %722 = vst [vmem:[#allocation2 + $0x188] sm:$0xff] %v600
    %723 = vst [vmem:[#allocation2 + $0x190] sm:$0xff] %v605
    %724 = vst [vmem:[#allocation2 + $0x198] sm:$0xff] %v610
    %725 = vst [vmem:[#allocation2 + $0x1a0] sm:$0xff] %v615
    %726 = vst [vmem:[#allocation2 + $0x1a8] sm:$0xff] %v620
    %727 = vst [vmem:[#allocation2 + $0x1b0] sm:$0xff] %v625
    %728 = vst [vmem:[#allocation2 + $0x1b8] sm:$0xff] %v630
    %729 = vst [vmem:[#allocation2 + $0x1c0] sm:$0xff] %v635
    %730 = vst [vmem:[#allocation2 + $0x1c8] sm:$0xff] %v640
    %731 = vst [vmem:[#allocation2 + $0x1d0] sm:$0xff] %v645
    %732 = vst [vmem:[#allocation2 + $0x1d8] sm:$0xff] %v650
    %733 = vst [vmem:[#allocation2 + $0x1e0] sm:$0xff] %v655
    %734 = vst [vmem:[#allocation2 + $0x1e8] sm:$0xff] %v660
    %735 = vst [vmem:[#allocation2 + $0x1f0] sm:$0xff] %v665
    %736 = vst [vmem:[#allocation2 + $0x1f8] sm:$0xff] %v670
    // Predicated region
    $region14: #{tpu_custom_call.1} parent=1 // pred_check
      _
    $region15: #{tpu_custom_call.1} parent=1 // pred_check_branch
      %738 = sbr.rel (0) target = $region17
    $region16: #{tpu_custom_call.1} parent=1 // pred_region
      %s740 = ssub.s32 8192, 8192
      %741 = vsyncadd [#allocation3], %s740
      %s742 = sshll.u32 [#allocation2], 4
      %s743 = int_to_ptr.vmem [resolvable:$true] %s742
      %748 = dma.vmem_to_hbm [thread:$0]  %s743, 8192, %s3, [#allocation3], 128, 128, 8
    $region17: #{tpu_custom_call.1} parent=1 // pred_fallthru
      _
    // Predicated region
    $region18: #{tpu_custom_call.1} parent=1 // pred_check
      _
    $region19: #{tpu_custom_call.1} parent=1 // pred_check_branch
      %750 = sbr.rel (0) target = $region21
    $region20: #{tpu_custom_call.1} parent=1 // pred_region
      %751 = dma.done [#allocation3], 8192
    $region21: #{tpu_custom_call.1} parent=1 // pred_fallthru
      _
    %752 = vsyncpa [#allocation3], 1

</llo_original>
